<compile_context>
chip_gen: v7x
topology: tpu7x:2x2x1
jax: 0.10.0
libtpu: 0.0.40
codegen_flags: <defaults>
</compile_context>

<pallas_src>
import functools

import jax
import jax.numpy as jnp
from jax.experimental import pallas as pl
from jax.experimental.pallas import tpu as pltpu

NEG_SLOPE = 0.01  # nn.LeakyReLU default
BN_EPS = 1e-5     # nn.BatchNorm2d default


def _leaky_relu(z):
    return jnp.where(z >= 0, z, NEG_SLOPE * z)


def residual_block_kernel(x_ref, w1_ref, sh1_ref, w2_ref, sh2_ref, mask_ref,
                          o_ref, *, shifts, B):
    # Per-tap border-validity rows (9, HW), loaded once per grid step and
    # hoisted out of the image loop (no per-iter broadcast rebuild).
    masks = mask_ref[...]                       # (9, HW) f32 0/1
    mrows = [masks[k][None, :] for k in range(9)]

    w1 = w1_ref[...]                            # (C, 9C), BN1 scale pre-folded
    w2 = w2_ref[...]                            # (C, 9C), BN2 scale pre-folded
    sh1 = sh1_ref[...]                          # (C, 1)
    sh2 = sh2_ref[...]                          # (C, 1)
    cdt = w1.dtype                              # f32 or bf16 MXU operand dtype

    def im2col(v):  # (C, HW) f32 -> (9*C, HW) in the matmul operand dtype
        taps = []
        for k in range(9):
            r = pltpu.roll(v, shift=shifts[k], axis=1) if shifts[k] else v
            taps.append((r * mrows[k]).astype(cdt))
        return jnp.concatenate(taps, axis=0)

    # Static unroll over the B images of this batch tile (B is small); the
    # scheduler can overlap conv2(i)'s MXU drain with conv1(i+1)'s pushes.
    for b in range(B):
        xb = x_ref[b]                           # (C, HW) f32

        # conv1 (single im2col matmul) + folded BN1 shift + LeakyReLU
        h = jnp.dot(w1, im2col(xb), preferred_element_type=jnp.float32)
        h = _leaky_relu(h + sh1)

        # conv2 + folded BN2 shift + residual add + LeakyReLU
        out = jnp.dot(w2, im2col(h), preferred_element_type=jnp.float32)
        out = _leaky_relu(out + sh2 + xb)

        o_ref[b] = out.astype(o_ref.dtype)


def _fold_bn(conv_b, gamma, beta, mean, var):
    scale = gamma / jnp.sqrt(var + BN_EPS)      # (C,)
    shift = scale * (conv_b - mean) + beta      # (C,)
    return scale[:, None], shift[:, None]       # (C, 1): per-row in CHW layout


@functools.partial(jax.jit, static_argnames=("batch_tile", "use_bf16_operands"))
def residual_block(x_nchw, params, *, batch_tile=None, use_bf16_operands=False):
    """x_nchw: (N, C, H, W) f32 — same convention as the PyTorch module."""
    N, C, H, W = x_nchw.shape
    HW = H * W

    # Batch tile: default keeps >= 2 grid steps so v7x's two TensorCores both
    # get work (dimension_semantics="parallel"); on v5e/v6e the extra step only
    # costs ~0.35 us. Pass batch_tile=N to fuse everything on single-TC chips.
    if batch_tile is None:
        batch_tile = max(1, -(-N // 2))
    B = batch_tile
    num_tiles = -(-N // B)
    n_pad = num_tiles * B

    # (C_out, C_in, kh, kw) -> (C_out, kh, kw, C_in) -> (C_out, 9*C_in); tap k = kh*3+kw
    w1m = jnp.transpose(params["conv1_w"], (0, 2, 3, 1)).reshape(C, 9 * C)
    w2m = jnp.transpose(params["conv2_w"], (0, 2, 3, 1)).reshape(C, 9 * C)
    s1, sh1 = _fold_bn(params["conv1_b"], params["bn1_gamma"], params["bn1_beta"],
                       params["bn1_mean"], params["bn1_var"])
    s2, sh2 = _fold_bn(params["conv2_b"], params["bn2_gamma"], params["bn2_beta"],
                       params["bn2_mean"], params["bn2_var"])
    # Fold the BN scale (per output channel == per weight row) into the weights.
    w1m = w1m * s1
    w2m = w2m * s2
    cdt = jnp.bfloat16 if use_bf16_operands else jnp.float32
    w1m = w1m.astype(cdt)
    w2m = w2m.astype(cdt)

    # Per-tap lane shifts (static ints) and border-validity mask table (9, HW):
    # the masks kill the wrap-around rows/cols introduced by the roll, which is
    # exactly the zero padding of the conv. Computed once here, DMA'd once.
    pos = jnp.arange(HW, dtype=jnp.int32)
    yy, xx = pos // W, pos % W
    shifts, mask_rows = [], []
    for k in range(9):
        dy, dx = k // 3 - 1, k % 3 - 1
        shifts.append(int((-(dy * W + dx)) % HW))
        mask_rows.append((yy + dy >= 0) & (yy + dy < H) & (xx + dx >= 0) & (xx + dx < W))
    mask_tbl = jnp.stack(mask_rows, axis=0).astype(jnp.float32)   # (9, HW)

    x_flat = x_nchw.reshape(N, C, HW).astype(jnp.float32)   # free reshape, no transpose
    if n_pad != N:
        x_flat = jnp.pad(x_flat, ((0, n_pad - N), (0, 0), (0, 0)))

    out_flat = pl.pallas_call(
        functools.partial(residual_block_kernel, shifts=tuple(shifts), B=B),
        out_shape=jax.ShapeDtypeStruct((n_pad, C, HW), jnp.float32),
        grid=(num_tiles,),
        in_specs=[
            pl.BlockSpec((B, C, HW), lambda n: (n, 0, 0)),    # x (B images, CHW-flat)
            pl.BlockSpec((C, 9 * C), lambda n: (0, 0)),       # conv1 weights (BN1 scale folded)
            pl.BlockSpec((C, 1), lambda n: (0, 0)),           # bn1 shift
            pl.BlockSpec((C, 9 * C), lambda n: (0, 0)),       # conv2 weights (BN2 scale folded)
            pl.BlockSpec((C, 1), lambda n: (0, 0)),           # bn2 shift
            pl.BlockSpec((9, HW), lambda n: (0, 0)),          # border-mask table
        ],
        out_specs=pl.BlockSpec((B, C, HW), lambda n: (n, 0, 0)),
        compiler_params=pltpu.CompilerParams(dimension_semantics=("parallel",)),
        # vmem_limit_bytes / pl.Buffered(3) on the x input only needed at much
        # larger B*C*HW; not required at this problem size.
    )(x_flat, w1m, sh1, w2m, sh2, mask_tbl)

    return out_flat[:N].reshape(N, C, H, W)


# ---------------- pure-JAX reference (NCHW, mirrors the PyTorch forward) ----------------
def reference(x, params):
    def conv(x, w, b):
        y = jax.lax.conv_general_dilated(
            x, w, window_strides=(1, 1), padding=((1, 1), (1, 1)),
            dimension_numbers=("NCHW", "OIHW", "NCHW"))
        return y + b[None, :, None, None]

    def bn(y, g, b, m, v):
        return (g[None, :, None, None] * (y - m[None, :, None, None])
                / jnp.sqrt(v[None, :, None, None] + BN_EPS) + b[None, :, None, None])

    out = _leaky_relu(bn(conv(x, params["conv1_w"], params["conv1_b"]),
                         params["bn1_gamma"], params["bn1_beta"],
                         params["bn1_mean"], params["bn1_var"]))
    out = bn(conv(out, params["conv2_w"], params["conv2_b"]),
             params["bn2_gamma"], params["bn2_beta"],
             params["bn2_mean"], params["bn2_var"])
    return _leaky_relu(out + x)


def make_params(key, channels):
    ks = jax.random.split(key, 12)
    C = channels
    return {
        "conv1_w": jax.random.normal(ks[0], (C, C, 3, 3), jnp.float32) * 0.1,
        "conv1_b": jax.random.normal(ks[1], (C,), jnp.float32) * 0.1,
        "bn1_gamma": jax.random.uniform(ks[2], (C,), jnp.float32, 0.5, 1.5),
        "bn1_beta": jax.random.normal(ks[3], (C,), jnp.float32) * 0.1,
        "bn1_mean": jax.random.normal(ks[4], (C,), jnp.float32) * 0.1,
        "bn1_var": jax.random.uniform(ks[5], (C,), jnp.float32, 0.5, 1.5),
        "conv2_w": jax.random.normal(ks[6], (C, C, 3, 3), jnp.float32) * 0.1,
        "conv2_b": jax.random.normal(ks[7], (C,), jnp.float32) * 0.1,
        "bn2_gamma": jax.random.uniform(ks[8], (C,), jnp.float32, 0.5, 1.5),
        "bn2_beta": jax.random.normal(ks[9], (C,), jnp.float32) * 0.1,
        "bn2_mean": jax.random.normal(ks[10], (C,), jnp.float32) * 0.1,
        "bn2_var": jax.random.uniform(ks[11], (C,), jnp.float32, 0.5, 1.5),
    }


if __name__ == "__main__":
    # N=4 -> 2 grid steps x B=2 images per step (exercises batch tiling and
    # keeps two "parallel" steps for v7x's two TensorCores).
    N, C, H, W = 4, 8, 16, 16
    key = jax.random.PRNGKey(0)
    kx, kp = jax.random.split(key)
    x = jax.random.normal(kx, (N, C, H, W), jnp.float32)
    params = make_params(kp, C)

    ref = jax.block_until_ready(reference(x, params))

    # f32-operand path (default): tight match to the f32 reference.
    out = jax.block_until_ready(residual_block(x, params))
    assert out.shape == ref.shape == (N, C, H, W)
    if not jnp.allclose(out, ref, atol=1e-4, rtol=1e-4):
        raise AssertionError("Pallas kernel (f32 operands) mismatch vs JAX reference")

    # bf16-operand path (v6e/v7x MXU throughput): f32 accumulation, looser tolerance.
    out_bf16 = jax.block_until_ready(residual_block(x, params, use_bf16_operands=True))
    if not jnp.allclose(out_bf16, ref, atol=1e-1, rtol=1e-1):
        raise AssertionError("Pallas kernel (bf16 operands) mismatch vs JAX reference")

    print("KERNEL_OK")
</pallas_src>

<mosaic_0001>
module attributes {stable_mosaic.version = 11 : i64} {
  func.func @residual_block_kernel(%arg0: i32, %arg1: memref<2x8x256xf32, #tpu.memory_space<vmem>>, %arg2: memref<8x72xf32, #tpu.memory_space<vmem>>, %arg3: memref<8x1xf32, #tpu.memory_space<vmem>>, %arg4: memref<8x72xf32, #tpu.memory_space<vmem>>, %arg5: memref<8x1xf32, #tpu.memory_space<vmem>>, %arg6: memref<9x256xf32, #tpu.memory_space<vmem>>, %arg7: memref<2x8x256xf32, #tpu.memory_space<vmem>>) attributes {dimension_semantics = [#tpu.dimension_semantics<parallel>], iteration_bounds = array<i64: 2>, scalar_prefetch = 0 : i64, scratch_operands = 0 : i64, tpu.core_type = #tpu.core_type<tc>, window_params = [{transform_indices = @transform_0, window_bounds = array<i64: 2, 8, 256>}, {pipeline_mode = #tpu.pipeline_mode<synchronous>, transform_indices = @transform_1, window_bounds = array<i64: 8, 72>}, {pipeline_mode = #tpu.pipeline_mode<synchronous>, transform_indices = @transform_2, window_bounds = array<i64: 8, 1>}, {pipeline_mode = #tpu.pipeline_mode<synchronous>, transform_indices = @transform_3, window_bounds = array<i64: 8, 72>}, {pipeline_mode = #tpu.pipeline_mode<synchronous>, transform_indices = @transform_4, window_bounds = array<i64: 8, 1>}, {pipeline_mode = #tpu.pipeline_mode<synchronous>, transform_indices = @transform_5, window_bounds = array<i64: 9, 256>}, {transform_indices = @transform_6, window_bounds = array<i64: 2, 8, 256>}]} {
    %c0 = arith.constant 0 : index
    %c0_0 = arith.constant 0 : index
    %0 = vector.load %arg6[%c0, %c0_0] : memref<9x256xf32, #tpu.memory_space<vmem>>, vector<9x256xf32>
    %1 = vector.extract_strided_slice %0 {offsets = [0, 0], sizes = [1, 256], strides = [1, 1]} : vector<9x256xf32> to vector<1x256xf32>
    %2 = vector.shape_cast %1 : vector<1x256xf32> to vector<256xf32>
    %3 = vector.shape_cast %2 : vector<256xf32> to vector<1x256xf32>
    %4 = vector.extract_strided_slice %0 {offsets = [1, 0], sizes = [1, 256], strides = [1, 1]} : vector<9x256xf32> to vector<1x256xf32>
    %5 = vector.shape_cast %4 : vector<1x256xf32> to vector<256xf32>
    %6 = vector.shape_cast %5 : vector<256xf32> to vector<1x256xf32>
    %7 = vector.extract_strided_slice %0 {offsets = [2, 0], sizes = [1, 256], strides = [1, 1]} : vector<9x256xf32> to vector<1x256xf32>
    %8 = vector.shape_cast %7 : vector<1x256xf32> to vector<256xf32>
    %9 = vector.shape_cast %8 : vector<256xf32> to vector<1x256xf32>
    %10 = vector.extract_strided_slice %0 {offsets = [3, 0], sizes = [1, 256], strides = [1, 1]} : vector<9x256xf32> to vector<1x256xf32>
    %11 = vector.shape_cast %10 : vector<1x256xf32> to vector<256xf32>
    %12 = vector.shape_cast %11 : vector<256xf32> to vector<1x256xf32>
    %13 = vector.extract_strided_slice %0 {offsets = [4, 0], sizes = [1, 256], strides = [1, 1]} : vector<9x256xf32> to vector<1x256xf32>
    %14 = vector.shape_cast %13 : vector<1x256xf32> to vector<256xf32>
    %15 = vector.shape_cast %14 : vector<256xf32> to vector<1x256xf32>
    %16 = vector.extract_strided_slice %0 {offsets = [5, 0], sizes = [1, 256], strides = [1, 1]} : vector<9x256xf32> to vector<1x256xf32>
    %17 = vector.shape_cast %16 : vector<1x256xf32> to vector<256xf32>
    %18 = vector.shape_cast %17 : vector<256xf32> to vector<1x256xf32>
    %19 = vector.extract_strided_slice %0 {offsets = [6, 0], sizes = [1, 256], strides = [1, 1]} : vector<9x256xf32> to vector<1x256xf32>
    %20 = vector.shape_cast %19 : vector<1x256xf32> to vector<256xf32>
    %21 = vector.shape_cast %20 : vector<256xf32> to vector<1x256xf32>
    %22 = vector.extract_strided_slice %0 {offsets = [7, 0], sizes = [1, 256], strides = [1, 1]} : vector<9x256xf32> to vector<1x256xf32>
    %23 = vector.shape_cast %22 : vector<1x256xf32> to vector<256xf32>
    %24 = vector.shape_cast %23 : vector<256xf32> to vector<1x256xf32>
    %25 = vector.extract_strided_slice %0 {offsets = [8, 0], sizes = [1, 256], strides = [1, 1]} : vector<9x256xf32> to vector<1x256xf32>
    %26 = vector.shape_cast %25 : vector<1x256xf32> to vector<256xf32>
    %27 = vector.shape_cast %26 : vector<256xf32> to vector<1x256xf32>
    %c0_1 = arith.constant 0 : index
    %c0_2 = arith.constant 0 : index
    %28 = vector.load %arg2[%c0_1, %c0_2] : memref<8x72xf32, #tpu.memory_space<vmem>>, vector<8x72xf32>
    %c0_3 = arith.constant 0 : index
    %c0_4 = arith.constant 0 : index
    %29 = vector.load %arg4[%c0_3, %c0_4] : memref<8x72xf32, #tpu.memory_space<vmem>>, vector<8x72xf32>
    %c0_5 = arith.constant 0 : index
    %c0_6 = arith.constant 0 : index
    %30 = vector.load %arg3[%c0_5, %c0_6] : memref<8x1xf32, #tpu.memory_space<vmem>>, vector<8x1xf32>
    %c0_7 = arith.constant 0 : index
    %c0_8 = arith.constant 0 : index
    %31 = vector.load %arg5[%c0_7, %c0_8] : memref<8x1xf32, #tpu.memory_space<vmem>>, vector<8x1xf32>
    %c0_9 = arith.constant 0 : index
    %c0_10 = arith.constant 0 : index
    %c0_11 = arith.constant 0 : index
    %32 = vector.load %arg1[%c0_9, %c0_10, %c0_11] : memref<2x8x256xf32, #tpu.memory_space<vmem>>, vector<1x8x256xf32>
    %33 = vector.shape_cast %32 : vector<1x8x256xf32> to vector<8x256xf32>
    %c17_i32 = arith.constant 17 : i32
    %34 = tpu.dynamic_rotate %33 by %c17_i32 dim 1 : vector<8x256xf32>, i32 -> vector<8x256xf32>
    %35 = vector.broadcast %3 : vector<1x256xf32> to vector<8x256xf32>
    %36 = arith.mulf %34, %35 : vector<8x256xf32>
    %c16_i32 = arith.constant 16 : i32
    %37 = tpu.dynamic_rotate %33 by %c16_i32 dim 1 : vector<8x256xf32>, i32 -> vector<8x256xf32>
    %38 = vector.broadcast %6 : vector<1x256xf32> to vector<8x256xf32>
    %39 = arith.mulf %37, %38 : vector<8x256xf32>
    %c15_i32 = arith.constant 15 : i32
    %40 = tpu.dynamic_rotate %33 by %c15_i32 dim 1 : vector<8x256xf32>, i32 -> vector<8x256xf32>
    %41 = vector.broadcast %9 : vector<1x256xf32> to vector<8x256xf32>
    %42 = arith.mulf %40, %41 : vector<8x256xf32>
    %c1_i32 = arith.constant 1 : i32
    %43 = tpu.dynamic_rotate %33 by %c1_i32 dim 1 : vector<8x256xf32>, i32 -> vector<8x256xf32>
    %44 = vector.broadcast %12 : vector<1x256xf32> to vector<8x256xf32>
    %45 = arith.mulf %43, %44 : vector<8x256xf32>
    %46 = vector.broadcast %15 : vector<1x256xf32> to vector<8x256xf32>
    %47 = arith.mulf %33, %46 : vector<8x256xf32>
    %c255_i32 = arith.constant 255 : i32
    %48 = tpu.dynamic_rotate %33 by %c255_i32 dim 1 : vector<8x256xf32>, i32 -> vector<8x256xf32>
    %49 = vector.broadcast %18 : vector<1x256xf32> to vector<8x256xf32>
    %50 = arith.mulf %48, %49 : vector<8x256xf32>
    %c241_i32 = arith.constant 241 : i32
    %51 = tpu.dynamic_rotate %33 by %c241_i32 dim 1 : vector<8x256xf32>, i32 -> vector<8x256xf32>
    %52 = vector.broadcast %21 : vector<1x256xf32> to vector<8x256xf32>
    %53 = arith.mulf %51, %52 : vector<8x256xf32>
    %c240_i32 = arith.constant 240 : i32
    %54 = tpu.dynamic_rotate %33 by %c240_i32 dim 1 : vector<8x256xf32>, i32 -> vector<8x256xf32>
    %55 = vector.broadcast %24 : vector<1x256xf32> to vector<8x256xf32>
    %56 = arith.mulf %54, %55 : vector<8x256xf32>
    %c239_i32 = arith.constant 239 : i32
    %57 = tpu.dynamic_rotate %33 by %c239_i32 dim 1 : vector<8x256xf32>, i32 -> vector<8x256xf32>
    %58 = vector.broadcast %27 : vector<1x256xf32> to vector<8x256xf32>
    %59 = arith.mulf %57, %58 : vector<8x256xf32>
    %60 = tpu.concatenate %36, %39, %42, %45, %47, %50, %53, %56, %59 in 0 : vector<8x256xf32>, vector<8x256xf32>, vector<8x256xf32>, vector<8x256xf32>, vector<8x256xf32>, vector<8x256xf32>, vector<8x256xf32>, vector<8x256xf32>, vector<8x256xf32> -> vector<72x256xf32>
    %cst = arith.constant dense<0.000000e+00> : vector<8x256xf32>
    %61 = tpu.matmul %28, %60, %cst {dimension_numbers = #tpu.dot_dimension_numbers<[1], [0], [0], [1], [0, 0, 1, 1], [], []>} : vector<8x72xf32>, vector<72x256xf32>, vector<8x256xf32> -> vector<8x256xf32>
    %62 = vector.broadcast %30 : vector<8x1xf32> to vector<8x256xf32>
    %63 = arith.addf %61, %62 : vector<8x256xf32>
    %cst_12 = arith.constant 0.000000e+00 : f32
    %64 = vector.broadcast %cst_12 : f32 to vector<8x256xf32>
    %65 = arith.cmpf oge, %63, %64 : vector<8x256xf32>
    %cst_13 = arith.constant 0.00999999977 : f32
    %66 = vector.broadcast %cst_13 : f32 to vector<8x256xf32>
    %67 = arith.mulf %66, %63 : vector<8x256xf32>
    %68 = arith.select %65, %63, %67 : vector<8x256xi1>, vector<8x256xf32>
    %c17_i32_14 = arith.constant 17 : i32
    %69 = tpu.dynamic_rotate %68 by %c17_i32_14 dim 1 : vector<8x256xf32>, i32 -> vector<8x256xf32>
    %70 = vector.broadcast %3 : vector<1x256xf32> to vector<8x256xf32>
    %71 = arith.mulf %69, %70 : vector<8x256xf32>
    %c16_i32_15 = arith.constant 16 : i32
    %72 = tpu.dynamic_rotate %68 by %c16_i32_15 dim 1 : vector<8x256xf32>, i32 -> vector<8x256xf32>
    %73 = vector.broadcast %6 : vector<1x256xf32> to vector<8x256xf32>
    %74 = arith.mulf %72, %73 : vector<8x256xf32>
    %c15_i32_16 = arith.constant 15 : i32
    %75 = tpu.dynamic_rotate %68 by %c15_i32_16 dim 1 : vector<8x256xf32>, i32 -> vector<8x256xf32>
    %76 = vector.broadcast %9 : vector<1x256xf32> to vector<8x256xf32>
    %77 = arith.mulf %75, %76 : vector<8x256xf32>
    %c1_i32_17 = arith.constant 1 : i32
    %78 = tpu.dynamic_rotate %68 by %c1_i32_17 dim 1 : vector<8x256xf32>, i32 -> vector<8x256xf32>
    %79 = vector.broadcast %12 : vector<1x256xf32> to vector<8x256xf32>
    %80 = arith.mulf %78, %79 : vector<8x256xf32>
    %81 = vector.broadcast %15 : vector<1x256xf32> to vector<8x256xf32>
    %82 = arith.mulf %68, %81 : vector<8x256xf32>
    %c255_i32_18 = arith.constant 255 : i32
    %83 = tpu.dynamic_rotate %68 by %c255_i32_18 dim 1 : vector<8x256xf32>, i32 -> vector<8x256xf32>
    %84 = vector.broadcast %18 : vector<1x256xf32> to vector<8x256xf32>
    %85 = arith.mulf %83, %84 : vector<8x256xf32>
    %c241_i32_19 = arith.constant 241 : i32
    %86 = tpu.dynamic_rotate %68 by %c241_i32_19 dim 1 : vector<8x256xf32>, i32 -> vector<8x256xf32>
    %87 = vector.broadcast %21 : vector<1x256xf32> to vector<8x256xf32>
    %88 = arith.mulf %86, %87 : vector<8x256xf32>
    %c240_i32_20 = arith.constant 240 : i32
    %89 = tpu.dynamic_rotate %68 by %c240_i32_20 dim 1 : vector<8x256xf32>, i32 -> vector<8x256xf32>
    %90 = vector.broadcast %24 : vector<1x256xf32> to vector<8x256xf32>
    %91 = arith.mulf %89, %90 : vector<8x256xf32>
    %c239_i32_21 = arith.constant 239 : i32
    %92 = tpu.dynamic_rotate %68 by %c239_i32_21 dim 1 : vector<8x256xf32>, i32 -> vector<8x256xf32>
    %93 = vector.broadcast %27 : vector<1x256xf32> to vector<8x256xf32>
    %94 = arith.mulf %92, %93 : vector<8x256xf32>
    %95 = tpu.concatenate %71, %74, %77, %80, %82, %85, %88, %91, %94 in 0 : vector<8x256xf32>, vector<8x256xf32>, vector<8x256xf32>, vector<8x256xf32>, vector<8x256xf32>, vector<8x256xf32>, vector<8x256xf32>, vector<8x256xf32>, vector<8x256xf32> -> vector<72x256xf32>
    %cst_22 = arith.constant dense<0.000000e+00> : vector<8x256xf32>
    %96 = tpu.matmul %29, %95, %cst_22 {dimension_numbers = #tpu.dot_dimension_numbers<[1], [0], [0], [1], [0, 0, 1, 1], [], []>} : vector<8x72xf32>, vector<72x256xf32>, vector<8x256xf32> -> vector<8x256xf32>
    %97 = vector.broadcast %31 : vector<8x1xf32> to vector<8x256xf32>
    %98 = arith.addf %96, %97 : vector<8x256xf32>
    %99 = arith.addf %98, %33 : vector<8x256xf32>
    %cst_23 = arith.constant 0.000000e+00 : f32
    %100 = vector.broadcast %cst_23 : f32 to vector<8x256xf32>
    %101 = arith.cmpf oge, %99, %100 : vector<8x256xf32>
    %cst_24 = arith.constant 0.00999999977 : f32
    %102 = vector.broadcast %cst_24 : f32 to vector<8x256xf32>
    %103 = arith.mulf %102, %99 : vector<8x256xf32>
    %104 = arith.select %101, %99, %103 : vector<8x256xi1>, vector<8x256xf32>
    %c0_25 = arith.constant 0 : index
    %c0_26 = arith.constant 0 : index
    %c0_27 = arith.constant 0 : index
    %105 = vector.load %arg7[%c0_25, %c0_26, %c0_27] : memref<2x8x256xf32, #tpu.memory_space<vmem>>, vector<1x8x256xf32>
    %106 = vector.shape_cast %105 : vector<1x8x256xf32> to vector<8x256xf32>
    %107 = vector.shape_cast %104 : vector<8x256xf32> to vector<1x8x256xf32>
    tpu.vector_store %arg7[%c0_25, %c0_26, %c0_27], %107 {strides = array<i32>} : memref<2x8x256xf32, #tpu.memory_space<vmem>>, vector<1x8x256xf32>,
    %c1 = arith.constant 1 : index
    %c0_28 = arith.constant 0 : index
    %c0_29 = arith.constant 0 : index
    %108 = vector.load %arg1[%c1, %c0_28, %c0_29] : memref<2x8x256xf32, #tpu.memory_space<vmem>>, vector<1x8x256xf32>
    %109 = vector.shape_cast %108 : vector<1x8x256xf32> to vector<8x256xf32>
    %c17_i32_30 = arith.constant 17 : i32
    %110 = tpu.dynamic_rotate %109 by %c17_i32_30 dim 1 : vector<8x256xf32>, i32 -> vector<8x256xf32>
    %111 = vector.broadcast %3 : vector<1x256xf32> to vector<8x256xf32>
    %112 = arith.mulf %110, %111 : vector<8x256xf32>
    %c16_i32_31 = arith.constant 16 : i32
    %113 = tpu.dynamic_rotate %109 by %c16_i32_31 dim 1 : vector<8x256xf32>, i32 -> vector<8x256xf32>
    %114 = vector.broadcast %6 : vector<1x256xf32> to vector<8x256xf32>
    %115 = arith.mulf %113, %114 : vector<8x256xf32>
    %c15_i32_32 = arith.constant 15 : i32
    %116 = tpu.dynamic_rotate %109 by %c15_i32_32 dim 1 : vector<8x256xf32>, i32 -> vector<8x256xf32>
    %117 = vector.broadcast %9 : vector<1x256xf32> to vector<8x256xf32>
    %118 = arith.mulf %116, %117 : vector<8x256xf32>
    %c1_i32_33 = arith.constant 1 : i32
    %119 = tpu.dynamic_rotate %109 by %c1_i32_33 dim 1 : vector<8x256xf32>, i32 -> vector<8x256xf32>
    %120 = vector.broadcast %12 : vector<1x256xf32> to vector<8x256xf32>
    %121 = arith.mulf %119, %120 : vector<8x256xf32>
    %122 = vector.broadcast %15 : vector<1x256xf32> to vector<8x256xf32>
    %123 = arith.mulf %109, %122 : vector<8x256xf32>
    %c255_i32_34 = arith.constant 255 : i32
    %124 = tpu.dynamic_rotate %109 by %c255_i32_34 dim 1 : vector<8x256xf32>, i32 -> vector<8x256xf32>
    %125 = vector.broadcast %18 : vector<1x256xf32> to vector<8x256xf32>
    %126 = arith.mulf %124, %125 : vector<8x256xf32>
    %c241_i32_35 = arith.constant 241 : i32
    %127 = tpu.dynamic_rotate %109 by %c241_i32_35 dim 1 : vector<8x256xf32>, i32 -> vector<8x256xf32>
    %128 = vector.broadcast %21 : vector<1x256xf32> to vector<8x256xf32>
    %129 = arith.mulf %127, %128 : vector<8x256xf32>
    %c240_i32_36 = arith.constant 240 : i32
    %130 = tpu.dynamic_rotate %109 by %c240_i32_36 dim 1 : vector<8x256xf32>, i32 -> vector<8x256xf32>
    %131 = vector.broadcast %24 : vector<1x256xf32> to vector<8x256xf32>
    %132 = arith.mulf %130, %131 : vector<8x256xf32>
    %c239_i32_37 = arith.constant 239 : i32
    %133 = tpu.dynamic_rotate %109 by %c239_i32_37 dim 1 : vector<8x256xf32>, i32 -> vector<8x256xf32>
    %134 = vector.broadcast %27 : vector<1x256xf32> to vector<8x256xf32>
    %135 = arith.mulf %133, %134 : vector<8x256xf32>
    %136 = tpu.concatenate %112, %115, %118, %121, %123, %126, %129, %132, %135 in 0 : vector<8x256xf32>, vector<8x256xf32>, vector<8x256xf32>, vector<8x256xf32>, vector<8x256xf32>, vector<8x256xf32>, vector<8x256xf32>, vector<8x256xf32>, vector<8x256xf32> -> vector<72x256xf32>
    %cst_38 = arith.constant dense<0.000000e+00> : vector<8x256xf32>
    %137 = tpu.matmul %28, %136, %cst_38 {dimension_numbers = #tpu.dot_dimension_numbers<[1], [0], [0], [1], [0, 0, 1, 1], [], []>} : vector<8x72xf32>, vector<72x256xf32>, vector<8x256xf32> -> vector<8x256xf32>
    %138 = vector.broadcast %30 : vector<8x1xf32> to vector<8x256xf32>
    %139 = arith.addf %137, %138 : vector<8x256xf32>
    %cst_39 = arith.constant 0.000000e+00 : f32
    %140 = vector.broadcast %cst_39 : f32 to vector<8x256xf32>
    %141 = arith.cmpf oge, %139, %140 : vector<8x256xf32>
    %cst_40 = arith.constant 0.00999999977 : f32
    %142 = vector.broadcast %cst_40 : f32 to vector<8x256xf32>
    %143 = arith.mulf %142, %139 : vector<8x256xf32>
    %144 = arith.select %141, %139, %143 : vector<8x256xi1>, vector<8x256xf32>
    %c17_i32_41 = arith.constant 17 : i32
    %145 = tpu.dynamic_rotate %144 by %c17_i32_41 dim 1 : vector<8x256xf32>, i32 -> vector<8x256xf32>
    %146 = vector.broadcast %3 : vector<1x256xf32> to vector<8x256xf32>
    %147 = arith.mulf %145, %146 : vector<8x256xf32>
    %c16_i32_42 = arith.constant 16 : i32
    %148 = tpu.dynamic_rotate %144 by %c16_i32_42 dim 1 : vector<8x256xf32>, i32 -> vector<8x256xf32>
    %149 = vector.broadcast %6 : vector<1x256xf32> to vector<8x256xf32>
    %150 = arith.mulf %148, %149 : vector<8x256xf32>
    %c15_i32_43 = arith.constant 15 : i32
    %151 = tpu.dynamic_rotate %144 by %c15_i32_43 dim 1 : vector<8x256xf32>, i32 -> vector<8x256xf32>
    %152 = vector.broadcast %9 : vector<1x256xf32> to vector<8x256xf32>
    %153 = arith.mulf %151, %152 : vector<8x256xf32>
    %c1_i32_44 = arith.constant 1 : i32
    %154 = tpu.dynamic_rotate %144 by %c1_i32_44 dim 1 : vector<8x256xf32>, i32 -> vector<8x256xf32>
    %155 = vector.broadcast %12 : vector<1x256xf32> to vector<8x256xf32>
    %156 = arith.mulf %154, %155 : vector<8x256xf32>
    %157 = vector.broadcast %15 : vector<1x256xf32> to vector<8x256xf32>
    %158 = arith.mulf %144, %157 : vector<8x256xf32>
    %c255_i32_45 = arith.constant 255 : i32
    %159 = tpu.dynamic_rotate %144 by %c255_i32_45 dim 1 : vector<8x256xf32>, i32 -> vector<8x256xf32>
    %160 = vector.broadcast %18 : vector<1x256xf32> to vector<8x256xf32>
    %161 = arith.mulf %159, %160 : vector<8x256xf32>
    %c241_i32_46 = arith.constant 241 : i32
    %162 = tpu.dynamic_rotate %144 by %c241_i32_46 dim 1 : vector<8x256xf32>, i32 -> vector<8x256xf32>
    %163 = vector.broadcast %21 : vector<1x256xf32> to vector<8x256xf32>
    %164 = arith.mulf %162, %163 : vector<8x256xf32>
    %c240_i32_47 = arith.constant 240 : i32
    %165 = tpu.dynamic_rotate %144 by %c240_i32_47 dim 1 : vector<8x256xf32>, i32 -> vector<8x256xf32>
    %166 = vector.broadcast %24 : vector<1x256xf32> to vector<8x256xf32>
    %167 = arith.mulf %165, %166 : vector<8x256xf32>
    %c239_i32_48 = arith.constant 239 : i32
    %168 = tpu.dynamic_rotate %144 by %c239_i32_48 dim 1 : vector<8x256xf32>, i32 -> vector<8x256xf32>
    %169 = vector.broadcast %27 : vector<1x256xf32> to vector<8x256xf32>
    %170 = arith.mulf %168, %169 : vector<8x256xf32>
    %171 = tpu.concatenate %147, %150, %153, %156, %158, %161, %164, %167, %170 in 0 : vector<8x256xf32>, vector<8x256xf32>, vector<8x256xf32>, vector<8x256xf32>, vector<8x256xf32>, vector<8x256xf32>, vector<8x256xf32>, vector<8x256xf32>, vector<8x256xf32> -> vector<72x256xf32>
    %cst_49 = arith.constant dense<0.000000e+00> : vector<8x256xf32>
    %172 = tpu.matmul %29, %171, %cst_49 {dimension_numbers = #tpu.dot_dimension_numbers<[1], [0], [0], [1], [0, 0, 1, 1], [], []>} : vector<8x72xf32>, vector<72x256xf32>, vector<8x256xf32> -> vector<8x256xf32>
    %173 = vector.broadcast %31 : vector<8x1xf32> to vector<8x256xf32>
    %174 = arith.addf %172, %173 : vector<8x256xf32>
    %175 = arith.addf %174, %109 : vector<8x256xf32>
    %cst_50 = arith.constant 0.000000e+00 : f32
    %176 = vector.broadcast %cst_50 : f32 to vector<8x256xf32>
    %177 = arith.cmpf oge, %175, %176 : vector<8x256xf32>
    %cst_51 = arith.constant 0.00999999977 : f32
    %178 = vector.broadcast %cst_51 : f32 to vector<8x256xf32>
    %179 = arith.mulf %178, %175 : vector<8x256xf32>
    %180 = arith.select %177, %175, %179 : vector<8x256xi1>, vector<8x256xf32>
    %c1_52 = arith.constant 1 : index
    %c0_53 = arith.constant 0 : index
    %c0_54 = arith.constant 0 : index
    %181 = vector.load %arg7[%c1_52, %c0_53, %c0_54] : memref<2x8x256xf32, #tpu.memory_space<vmem>>, vector<1x8x256xf32>
    %182 = vector.shape_cast %181 : vector<1x8x256xf32> to vector<8x256xf32>
    %183 = vector.shape_cast %180 : vector<8x256xf32> to vector<1x8x256xf32>
    tpu.vector_store %arg7[%c1_52, %c0_53, %c0_54], %183 {strides = array<i32>} : memref<2x8x256xf32, #tpu.memory_space<vmem>>, vector<1x8x256xf32>,
    return
  }
  func.func @transform_0(%arg0: i32) -> (i32, i32, i32) {
    %c0_i32 = arith.constant 0 : i32
    %c0_i32_0 = arith.constant 0 : i32
    %c0_i32_1 = arith.constant 0 : i32
    return %arg0, %c0_i32, %c0_i32_0 : i32, i32, i32
  }
  func.func @transform_1(%arg0: i32) -> (i32, i32) {
    %c0_i32 = arith.constant 0 : i32
    %c0_i32_0 = arith.constant 0 : i32
    %c0_i32_1 = arith.constant 0 : i32
    return %c0_i32, %c0_i32_0 : i32, i32
  }
  func.func @transform_2(%arg0: i32) -> (i32, i32) {
    %c0_i32 = arith.constant 0 : i32
    %c0_i32_0 = arith.constant 0 : i32
    %c0_i32_1 = arith.constant 0 : i32
    return %c0_i32, %c0_i32_0 : i32, i32
  }
  func.func @transform_3(%arg0: i32) -> (i32, i32) {
    %c0_i32 = arith.constant 0 : i32
    %c0_i32_0 = arith.constant 0 : i32
    %c0_i32_1 = arith.constant 0 : i32
    return %c0_i32, %c0_i32_0 : i32, i32
  }
  func.func @transform_4(%arg0: i32) -> (i32, i32) {
    %c0_i32 = arith.constant 0 : i32
    %c0_i32_0 = arith.constant 0 : i32
    %c0_i32_1 = arith.constant 0 : i32
    return %c0_i32, %c0_i32_0 : i32, i32
  }
  func.func @transform_5(%arg0: i32) -> (i32, i32) {
    %c0_i32 = arith.constant 0 : i32
    %c0_i32_0 = arith.constant 0 : i32
    %c0_i32_1 = arith.constant 0 : i32
    return %c0_i32, %c0_i32_0 : i32, i32
  }
  func.func @transform_6(%arg0: i32) -> (i32, i32, i32) {
    %c0_i32 = arith.constant 0 : i32
    %c0_i32_0 = arith.constant 0 : i32
    %c0_i32_1 = arith.constant 0 : i32
    return %arg0, %c0_i32, %c0_i32_0 : i32, i32, i32
  }
}

</mosaic_0001>

<llo_original>
// kernel: residual_block.1
$region0: #{residual_block.1}
  #allocation0 [shape = 'u32[]', space=smem, size = 0x4, offset = 0x4, fixed_abs, tag = 'smem constant byte address 0x4 - core index']
  #allocation1 [shape = 'u32[144,128]{1,0:T(1,128)}', space=vmem, size = 0x12000, scoped, tag = 'internal scratch']
  %s0 = inlined_call_operand.vmem [shape: f32[4,8,256], index: 0, kind: input, shape index: {}]
  %s1 = inlined_call_operand.vmem [shape: f32[8,72], index: 1, kind: input, shape index: {}]
  %s2 = inlined_call_operand.vmem [shape: f32[8,1], index: 2, kind: input, shape index: {}]
  %s3 = inlined_call_operand.vmem [shape: f32[8,72], index: 3, kind: input, shape index: {}]
  %s4 = inlined_call_operand.vmem [shape: f32[8,1], index: 4, kind: input, shape index: {}]
  %s5 = inlined_call_operand.vmem [shape: f32[9,256], index: 5, kind: input, shape index: {}]
  %s6 = inlined_call_operand.vmem [shape: f32[4,8,256], index: 6, kind: output, shape index: {}]
  %s7 = sld [smem:[#allocation0]]
  $region57: #{residual_block.1} parent=0
    _
  %s9 = ssub.s32 1, %s7
  %s10 = scalar_select 0, %s9, %s7
  loop: start=0, step=1, limit=4
  $region2: #{residual_block.1} parent=0 // loop_pre_header
    _
  $region3: #{residual_block.1} parent=0 // loop_header
    %s12 = sphi 0, %s16
    %p13 = scmp.ge.s32.totalorder %s12, 4
    %s22 = sphi 0, %s24
    %s25 = sphi 0, %s22
    %s26 = sphi 0, %s25
    %s42 = sphi 0, %s26
    %s46 = sphi 0, %s46
    %s48 = sphi 0, %s46
    %s49 = sphi 0, %s48
    %s63 = sphi 0, %s49
    %s67 = sphi 0, %s67
    %s69 = sphi 0, %s67
    %s70 = sphi 0, %s69
    %s84 = sphi 0, %s70
    %s88 = sphi 0, %s88
    %s90 = sphi 0, %s88
    %s91 = sphi 0, %s90
    %s105 = sphi 0, %s91
    %s109 = sphi 0, %s109
    %s111 = sphi 0, %s109
    %s112 = sphi 0, %s111
    %s126 = sphi 0, %s112
    %s130 = sphi 0, %s130
    %s132 = sphi 0, %s130
    %s133 = sphi 0, %s132
    %s147 = sphi 0, %s133
    %s153 = sphi 0, %s155
    %s156 = sphi 0, %s153
    %s157 = sphi 0, %s156
    %s173 = sphi 0, %s157
  $region4: #{residual_block.1} parent=0 // loop_header_branch
    %15 = sbr.rel (%p13) target = $region8
  $region5: #{residual_block.1} parent=0 // loop_body
    %s17 = ssub.s32 %s12, 1
    %s18 = ssub.s32 %s12, 2
    %s19 = sadd.s32 %s12, 1
    %s20 = ssub.s32 %s12, %s19
    %p21 = scmp.eq.s32.totalorder %s20, 0
    %s23 = sadd.s32 %s22, 1
    %s24 = scalar_select %p21, %s22, %s23
    %p27 = pneg %p21
    %p28 = scmp.eq.s32.totalorder %s12, 1
    %p29 = por %p27, %p28
    %p30 = scmp.ne.s32.totalorder %s22, %s25
    %p31 = scmp.eq.s32.totalorder %s12, 0
    %p32 = por %p30, %p31
    %p33 = scmp.ne.s32.totalorder %s22, %s25
    %p34 = scmp.eq.s32.totalorder %s17, 1
    %p35 = por %p33, %p34
    %p36 = scmp.ne.s32.totalorder %s25, %s26
    %p37 = scmp.eq.s32.totalorder %s17, 0
    %p38 = por %p36, %p37
    %p39 = scmp.ne.s32.totalorder %s25, %s26
    %p40 = scmp.eq.s32.totalorder %s18, 1
    %p41 = por %p39, %p40
    %p43 = scmp.ne.s32.totalorder %s26, %s42
    %p44 = scmp.eq.s32.totalorder %s18, 0
    %p45 = por %p43, %p44
    %s47 = sadd.s32 %s46, 1
    %p50 = scmp.eq.s32.totalorder %s12, 1
    %p51 = scmp.ne.s32.totalorder %s46, %s48
    %p52 = scmp.eq.s32.totalorder %s12, 0
    %p53 = por %p51, %p52
    %p54 = scmp.ne.s32.totalorder %s46, %s48
    %p55 = scmp.eq.s32.totalorder %s17, 1
    %p56 = por %p54, %p55
    %p57 = scmp.ne.s32.totalorder %s48, %s49
    %p58 = scmp.eq.s32.totalorder %s17, 0
    %p59 = por %p57, %p58
    %p60 = scmp.ne.s32.totalorder %s48, %s49
    %p61 = scmp.eq.s32.totalorder %s18, 1
    %p62 = por %p60, %p61
    %p64 = scmp.ne.s32.totalorder %s49, %s63
    %p65 = scmp.eq.s32.totalorder %s18, 0
    %p66 = por %p64, %p65
    %s68 = sadd.s32 %s67, 1
    %p71 = scmp.eq.s32.totalorder %s12, 1
    %p72 = scmp.ne.s32.totalorder %s67, %s69
    %p73 = scmp.eq.s32.totalorder %s12, 0
    %p74 = por %p72, %p73
    %p75 = scmp.ne.s32.totalorder %s67, %s69
    %p76 = scmp.eq.s32.totalorder %s17, 1
    %p77 = por %p75, %p76
    %p78 = scmp.ne.s32.totalorder %s69, %s70
    %p79 = scmp.eq.s32.totalorder %s17, 0
    %p80 = por %p78, %p79
    %p81 = scmp.ne.s32.totalorder %s69, %s70
    %p82 = scmp.eq.s32.totalorder %s18, 1
    %p83 = por %p81, %p82
    %p85 = scmp.ne.s32.totalorder %s70, %s84
    %p86 = scmp.eq.s32.totalorder %s18, 0
    %p87 = por %p85, %p86
    %s89 = sadd.s32 %s88, 1
    %p92 = scmp.eq.s32.totalorder %s12, 1
    %p93 = scmp.ne.s32.totalorder %s88, %s90
    %p94 = scmp.eq.s32.totalorder %s12, 0
    %p95 = por %p93, %p94
    %p96 = scmp.ne.s32.totalorder %s88, %s90
    %p97 = scmp.eq.s32.totalorder %s17, 1
    %p98 = por %p96, %p97
    %p99 = scmp.ne.s32.totalorder %s90, %s91
    %p100 = scmp.eq.s32.totalorder %s17, 0
    %p101 = por %p99, %p100
    %p102 = scmp.ne.s32.totalorder %s90, %s91
    %p103 = scmp.eq.s32.totalorder %s18, 1
    %p104 = por %p102, %p103
    %p106 = scmp.ne.s32.totalorder %s91, %s105
    %p107 = scmp.eq.s32.totalorder %s18, 0
    %p108 = por %p106, %p107
    %s110 = sadd.s32 %s109, 1
    %p113 = scmp.eq.s32.totalorder %s12, 1
    %p114 = scmp.ne.s32.totalorder %s109, %s111
    %p115 = scmp.eq.s32.totalorder %s12, 0
    %p116 = por %p114, %p115
    %p117 = scmp.ne.s32.totalorder %s109, %s111
    %p118 = scmp.eq.s32.totalorder %s17, 1
    %p119 = por %p117, %p118
    %p120 = scmp.ne.s32.totalorder %s111, %s112
    %p121 = scmp.eq.s32.totalorder %s17, 0
    %p122 = por %p120, %p121
    %p123 = scmp.ne.s32.totalorder %s111, %s112
    %p124 = scmp.eq.s32.totalorder %s18, 1
    %p125 = por %p123, %p124
    %p127 = scmp.ne.s32.totalorder %s112, %s126
    %p128 = scmp.eq.s32.totalorder %s18, 0
    %p129 = por %p127, %p128
    %s131 = sadd.s32 %s130, 1
    %p134 = scmp.eq.s32.totalorder %s12, 1
    %p135 = scmp.ne.s32.totalorder %s130, %s132
    %p136 = scmp.eq.s32.totalorder %s12, 0
    %p137 = por %p135, %p136
    %p138 = scmp.ne.s32.totalorder %s130, %s132
    %p139 = scmp.eq.s32.totalorder %s17, 1
    %p140 = por %p138, %p139
    %p141 = scmp.ne.s32.totalorder %s132, %s133
    %p142 = scmp.eq.s32.totalorder %s17, 0
    %p143 = por %p141, %p142
    %p144 = scmp.ne.s32.totalorder %s132, %s133
    %p145 = scmp.eq.s32.totalorder %s18, 1
    %p146 = por %p144, %p145
    %p148 = scmp.ne.s32.totalorder %s133, %s147
    %p149 = scmp.eq.s32.totalorder %s18, 0
    %p150 = por %p148, %p149
    %s151 = ssub.s32 %s12, %s19
    %p152 = scmp.eq.s32.totalorder %s151, 0
    %s154 = sadd.s32 %s153, 1
    %s155 = scalar_select %p152, %s153, %s154
    %p158 = pneg %p152
    %p159 = scmp.eq.s32.totalorder %s12, 1
    %p160 = por %p158, %p159
    %p161 = scmp.ne.s32.totalorder %s153, %s156
    %p162 = scmp.eq.s32.totalorder %s12, 0
    %p163 = por %p161, %p162
    %p164 = scmp.ne.s32.totalorder %s153, %s156
    %p165 = scmp.eq.s32.totalorder %s17, 1
    %p166 = por %p164, %p165
    %p167 = scmp.ne.s32.totalorder %s156, %s157
    %p168 = scmp.eq.s32.totalorder %s17, 0
    %p169 = por %p167, %p168
    %p170 = scmp.ne.s32.totalorder %s156, %s157
    %p171 = scmp.eq.s32.totalorder %s18, 1
    %p172 = por %p170, %p171
    %p174 = scmp.ne.s32.totalorder %s157, %s173
    %p175 = scmp.eq.s32.totalorder %s18, 0
    %p176 = por %p174, %p175
    %p177 = scmp.le.s32.totalorder 1, %s12
    %p178 = scmp.lt.s32.totalorder %s12, 3
    %p179 = pnand %p177, %p178
    %p180 = pneg %p179
    // Predicated region
    $region9: #{residual_block.1} parent=5 // pred_check
      _
    $region10: #{residual_block.1} parent=5 // pred_check_branch
      %182 = sbr.rel (%p179) target = $region12
    $region11: #{residual_block.1} parent=5 // pred_region
      %s183 = ssub.s32 %s12, 1
      // Predicated region
      $region13: #{residual_block.1} parent=11 // pred_check
        %p184 = pneg %p59
      $region14: #{residual_block.1} parent=11 // pred_check_branch
        %186 = sbr.rel (%p184) target = $region16
      $region15: #{residual_block.1} parent=11 // pred_region
        _
      $region16: #{residual_block.1} parent=11 // pred_fallthru
        _
      // Predicated region
      $region17: #{residual_block.1} parent=11 // pred_check
        %p187 = pneg %p80
      $region18: #{residual_block.1} parent=11 // pred_check_branch
        %189 = sbr.rel (%p187) target = $region20
      $region19: #{residual_block.1} parent=11 // pred_region
        _
      $region20: #{residual_block.1} parent=11 // pred_fallthru
        _
      // Predicated region
      $region21: #{residual_block.1} parent=11 // pred_check
        %p190 = pneg %p101
      $region22: #{residual_block.1} parent=11 // pred_check_branch
        %192 = sbr.rel (%p190) target = $region24
      $region23: #{residual_block.1} parent=11 // pred_region
        _
      $region24: #{residual_block.1} parent=11 // pred_fallthru
        _
      // Predicated region
      $region25: #{residual_block.1} parent=11 // pred_check
        %p193 = pneg %p122
      $region26: #{residual_block.1} parent=11 // pred_check_branch
        %195 = sbr.rel (%p193) target = $region28
      $region27: #{residual_block.1} parent=11 // pred_region
        _
      $region28: #{residual_block.1} parent=11 // pred_fallthru
        _
      // Predicated region
      $region29: #{residual_block.1} parent=11 // pred_check
        %p196 = pneg %p143
      $region30: #{residual_block.1} parent=11 // pred_check_branch
        %198 = sbr.rel (%p196) target = $region32
      $region31: #{residual_block.1} parent=11 // pred_region
        _
      $region32: #{residual_block.1} parent=11 // pred_fallthru
        _
    $region12: #{residual_block.1} parent=5 // pred_fallthru
      _
    %p199 = scmp.lt.s32.totalorder %s12, 2
    // Predicated region
    $region33: #{residual_block.1} parent=5 // pred_check
      %p200 = pneg %p199
    $region34: #{residual_block.1} parent=5 // pred_check_branch
      %202 = sbr.rel (%p200) target = $region36
    $region35: #{residual_block.1} parent=5 // pred_region
      // Predicated region
      $region37: #{residual_block.1} parent=35 // pred_check
        %p203 = pneg %p32
      $region38: #{residual_block.1} parent=35 // pred_check_branch
        %205 = sbr.rel (%p203) target = $region40
      $region39: #{residual_block.1} parent=35 // pred_region
        %s206 = smul.u32 2, %s12
        %p207 = scmp.lt.s32.totalorder %s206, 3
        %s208 = scalar_select %p207, %s206, 3
        %s209 = smul.addr %s208, 2
        %s210 = smul.addr %s209, 8
        %s211 = scalar_lea.vmem %s0, %s210
        %s212 = smul.u32 2, %s12
      $region40: #{residual_block.1} parent=35 // pred_fallthru
        _
    $region36: #{residual_block.1} parent=5 // pred_fallthru
      _
    %p213 = scmp.le.s32.totalorder 1, %s12
    %p214 = scmp.lt.s32.totalorder %s12, 3
    %p215 = pnand %p213, %p214
    %p216 = pneg %p215
    // Predicated region
    $region41: #{residual_block.1} parent=5 // pred_check
      _
    $region42: #{residual_block.1} parent=5 // pred_check_branch
      %218 = sbr.rel (%p215) target = $region44
    $region43: #{residual_block.1} parent=5 // pred_region
      %s219 = ssub.s32 %s12, 1
      %s220 = smul.u32 2, %s17
      %p221 = scmp.lt.s32.totalorder %s220, 3
      %s222 = scalar_select %p221, %s220, 3
      %s223 = smul.addr %s222, 2
      %s224 = smul.addr %s223, 8
      %s225 = scalar_lea.vmem %s0, %s224
      %p226 = pneg %p38
      %p227 = pneg %p35
      %p228 = pneg %p59
      %p229 = pneg %p56
      %p230 = pneg %p80
      %p231 = pneg %p77
      %p232 = pneg %p101
      %p233 = pneg %p98
      %p234 = pneg %p122
      %p235 = pneg %p119
      %p236 = pneg %p143
      %p237 = pneg %p140
      %p238 = pneg %p169
      %p239 = pneg %p166
      %s240 = smul.u32 2, %s17
      %p241 = scmp.lt.s32.totalorder %s240, 3
      %s242 = scalar_select %p241, %s240, 3
      %s243 = smul.addr %s242, 2
      %s244 = smul.addr %s243, 8
      %s245 = scalar_lea.vmem %s6, %s244
      %s246 = smul.u32 2, %s17
      %p247 = scmp.lt.s32.totalorder %s246, 3
      %s248 = scalar_select %p247, %s246, 3
      %s249 = smul.addr %s248, 2
      %s250 = smul.addr %s249, 8
      %s251 = scalar_lea.vmem %s0, %s250
      %s252 = smul.u32 2, %s17
      %s253 = smul.u32 2, %s17
      %p254 = scmp.lt.s32.totalorder %s253, 3
      %s255 = scalar_select %p254, %s253, 3
      %s256 = smul.addr %s255, 2
      %s257 = smul.addr %s256, 8
      %s258 = scalar_lea.vmem %s6, %s257
      %s259 = smul.u32 2, %s17
      %v260 = vld [vmem:[%s5] sm:$0xff]
      %v261 = vld [vmem:[%s5 + $0x8] sm:$0xff]
      %v262 = vld [vmem:[%s5 + $0x10] sm:$0x1]
      %v263 = vld [vmem:[%s5 + $0x18] sm:$0x1]
      %v264 = vld [vmem:[%s1] sm:$0xff]
      %v265 = vld [vmem:[%s3] sm:$0xff]
      %v266 = vld [vmem:[%s2] sm:$0xff]
      %v267 = vld [vmem:[%s4] sm:$0xff]
      %v268 = vld [vmem:[%s251] sm:$0xff]
      %v269 = vld [vmem:[%s251 + $0x8] sm:$0xff]
      %270 = vrot.lane.b32.xlu0 %v268, 17
      %v271 = vpop.permute.xlu0 %270
      %272 = vrot.lane.b32.xlu0 %v269, 17
      %v273 = vpop.permute.xlu0 %272
      %v274 = vlaneseq
      %v275 = vand.u32 %v274, 127
      %vm276 = vcmp.lt.s32.totalorder %v275, 17
      %v277 = vsel %vm276, %v271, %v273
      %v278 = vsel %vm276, %v273, %v271
      %v279 = vlaneseq
      %v280 = vshrl.u32 %v279, 7
      %v281 = vsub.s32 0, %v280
      %v282 = vrot.slane %v260, %v281
      %v283 = vlaneseq
      %v284 = vshrl.u32 %v283, 7
      %v285 = vsub.s32 0, %v284
      %v286 = vrot.slane %v261, %v285
      %v287 = vmul.f32 %v278, %v282
      %v288 = vmul.f32 %v277, %v286
      %289 = vrot.lane.b32.xlu0 %v268, 16
      %v290 = vpop.permute.xlu0 %289
      %291 = vrot.lane.b32.xlu0 %v269, 16
      %v292 = vpop.permute.xlu0 %291
      %vm293 = vcmp.lt.s32.totalorder %v275, 16
      %v294 = vsel %vm293, %v290, %v292
      %v295 = vsel %vm293, %v292, %v290
      %v296 = vlaneseq
      %v297 = vshrl.u32 %v296, 7
      %v298 = vsub.s32 1, %v297
      %v299 = vrot.slane %v260, %v298
      %v300 = vlaneseq
      %v301 = vshrl.u32 %v300, 7
      %v302 = vsub.s32 1, %v301
      %v303 = vrot.slane %v261, %v302
      %v304 = vmul.f32 %v295, %v299
      %v305 = vmul.f32 %v294, %v303
      %306 = vrot.lane.b32.xlu0 %v268, 15
      %v307 = vpop.permute.xlu0 %306
      %308 = vrot.lane.b32.xlu0 %v269, 15
      %v309 = vpop.permute.xlu0 %308
      %vm310 = vcmp.lt.s32.totalorder %v275, 15
      %v311 = vsel %vm310, %v307, %v309
      %v312 = vsel %vm310, %v309, %v307
      %v313 = vlaneseq
      %v314 = vshrl.u32 %v313, 7
      %v315 = vsub.s32 2, %v314
      %v316 = vrot.slane %v260, %v315
      %v317 = vlaneseq
      %v318 = vshrl.u32 %v317, 7
      %v319 = vsub.s32 2, %v318
      %v320 = vrot.slane %v261, %v319
      %v321 = vmul.f32 %v312, %v316
      %v322 = vmul.f32 %v311, %v320
      %323 = vrot.lane.b32.xlu0 %v268, 1
      %v324 = vpop.permute.xlu0 %323
      %325 = vrot.lane.b32.xlu0 %v269, 1
      %v326 = vpop.permute.xlu0 %325
      %vm327 = vcmp.lt.s32.totalorder %v275, 1
      %v328 = vsel %vm327, %v324, %v326
      %v329 = vsel %vm327, %v326, %v324
      %v330 = vlaneseq
      %v331 = vshrl.u32 %v330, 7
      %v332 = vsub.s32 3, %v331
      %v333 = vrot.slane %v260, %v332
      %v334 = vlaneseq
      %v335 = vshrl.u32 %v334, 7
      %v336 = vsub.s32 3, %v335
      %v337 = vrot.slane %v261, %v336
      %v338 = vmul.f32 %v329, %v333
      %v339 = vmul.f32 %v328, %v337
      %v340 = vlaneseq
      %v341 = vshrl.u32 %v340, 7
      %v342 = vsub.s32 4, %v341
      %v343 = vrot.slane %v260, %v342
      %v344 = vlaneseq
      %v345 = vshrl.u32 %v344, 7
      %v346 = vsub.s32 4, %v345
      %v347 = vrot.slane %v261, %v346
      %v348 = vmul.f32 %v268, %v343
      %v349 = vmul.f32 %v269, %v347
      %350 = vrot.lane.b32.xlu0 %v268, 127
      %v351 = vpop.permute.xlu0 %350
      %352 = vrot.lane.b32.xlu0 %v269, 127
      %v353 = vpop.permute.xlu0 %352
      %vm354 = vcmp.lt.s32.totalorder %v275, 127
      %v355 = vsel %vm354, %v351, %v353
      %v356 = vsel %vm354, %v353, %v351
      %v357 = vlaneseq
      %v358 = vshrl.u32 %v357, 7
      %v359 = vsub.s32 5, %v358
      %v360 = vrot.slane %v260, %v359
      %v361 = vlaneseq
      %v362 = vshrl.u32 %v361, 7
      %v363 = vsub.s32 5, %v362
      %v364 = vrot.slane %v261, %v363
      %v365 = vmul.f32 %v355, %v360
      %v366 = vmul.f32 %v356, %v364
      %367 = vrot.lane.b32.xlu0 %v268, 113
      %v368 = vpop.permute.xlu0 %367
      %369 = vrot.lane.b32.xlu0 %v269, 113
      %v370 = vpop.permute.xlu0 %369
      %vm371 = vcmp.lt.s32.totalorder %v275, 113
      %v372 = vsel %vm371, %v368, %v370
      %v373 = vsel %vm371, %v370, %v368
      %v374 = vlaneseq
      %v375 = vshrl.u32 %v374, 7
      %v376 = vsub.s32 6, %v375
      %v377 = vrot.slane %v260, %v376
      %v378 = vlaneseq
      %v379 = vshrl.u32 %v378, 7
      %v380 = vsub.s32 6, %v379
      %v381 = vrot.slane %v261, %v380
      %v382 = vmul.f32 %v372, %v377
      %v383 = vmul.f32 %v373, %v381
      %384 = vrot.lane.b32.xlu0 %v268, 112
      %v385 = vpop.permute.xlu0 %384
      %386 = vrot.lane.b32.xlu0 %v269, 112
      %v387 = vpop.permute.xlu0 %386
      %vm388 = vcmp.lt.s32.totalorder %v275, 112
      %v389 = vsel %vm388, %v385, %v387
      %v390 = vsel %vm388, %v387, %v385
      %v391 = vlaneseq
      %v392 = vshrl.u32 %v391, 7
      %v393 = vsub.s32 7, %v392
      %v394 = vrot.slane %v260, %v393
      %v395 = vlaneseq
      %v396 = vshrl.u32 %v395, 7
      %v397 = vsub.s32 7, %v396
      %v398 = vrot.slane %v261, %v397
      %v399 = vmul.f32 %v389, %v394
      %v400 = vmul.f32 %v390, %v398
      %401 = vrot.lane.b32.xlu0 %v268, 111
      %v402 = vpop.permute.xlu0 %401
      %403 = vrot.lane.b32.xlu0 %v269, 111
      %v404 = vpop.permute.xlu0 %403
      %vm405 = vcmp.lt.s32.totalorder %v275, 111
      %v406 = vsel %vm405, %v402, %v404
      %v407 = vsel %vm405, %v404, %v402
      %v408 = vlaneseq
      %v409 = vshrl.u32 %v408, 7
      %v410 = vsub.s32 0, %v409
      %v411 = vrot.slane %v262, %v410
      %v412 = vlaneseq
      %v413 = vshrl.u32 %v412, 7
      %v414 = vsub.s32 0, %v413
      %v415 = vrot.slane %v263, %v414
      %v416 = vmul.f32 %v406, %v411
      %v417 = vmul.f32 %v407, %v415
      %419 = vset.pattern.permute.xlu0 0
      %420 = vperm.xlu0 %419, %v266
      %v421 = vpop.permute.xlu0 %420
      %vm423 = vcmask 588800
      %v425 = vsel %vm423, %v264, 0
      %427 = vmatprep.subr.mxu0 %v288
      %428 = vmatpush1.msra.mxu0 %v287
      %429 = vmatprep.subr.mxu0 %v305
      %430 = vmatpush1.msra.mxu0 %v304
      %431 = vmatprep.subr.mxu0 %v322
      %432 = vmatpush1.msra.mxu0 %v321
      %433 = vmatprep.subr.mxu0 %v339
      %434 = vmatpush1.msra.mxu0 %v338
      %435 = vmatprep.subr.mxu0 %v349
      %436 = vmatpush1.msra.mxu0 %v348
      %437 = vmatprep.subr.mxu0 %v366
      %438 = vmatpush1.msra.mxu0 %v365
      %439 = vmatprep.subr.mxu0 %v383
      %440 = vmatpush1.msra.mxu0 %v382
      %441 = vmatprep.subr.mxu0 %v400
      %442 = vmatpush1.msra.mxu0 %v399
      %443 = vmatprep.subr.mxu0 %v417
      %444 = vmatpush1.msra.mxu0 %v416
      %445 = vmatprep.subr.mxu0 0.0
      %446 = vmatpush1.msra.mxu0 0.0
      %447 = vmatprep.subr.mxu0 0.0
      %448 = vmatpush1.msra.mxu0 0.0
      %449 = vmatprep.subr.mxu0 0.0
      %450 = vmatpush1.msra.mxu0 0.0
      %451 = vmatprep.subr.mxu0 0.0
      %452 = vmatpush1.msra.mxu0 0.0
      %453 = vmatprep.subr.mxu0 0.0
      %454 = vmatpush1.msra.mxu0 0.0
      %455 = vmatprep.subr.mxu0 0.0
      %456 = vmatpush1.msra.mxu0 0.0
      %457 = vmatprep.subr.mxu0 0.0
      %458 = vmatpush1.msra.mxu0 0.0
      %459 = vmatprep.subr.mxu0 0.0
      %460 = vmatpush1.msra.mxu0 0.0
      %461 = vmatprep.subr.mxu0 0.0
      %462 = vmatpush1.msra.mxu0 0.0
      %463 = vmatprep.subr.mxu0 0.0
      %464 = vmatpush1.msra.mxu0 0.0
      %465 = vmatprep.subr.mxu0 0.0
      %466 = vmatpush1.msra.mxu0 0.0
      %467 = vmatprep.subr.mxu0 0.0
      %468 = vmatpush1.msra.mxu0 0.0
      %469 = vmatprep.subr.mxu0 0.0
      %470 = vmatpush1.msra.mxu0 0.0
      %471 = vmatprep.subr.mxu0 0.0
      %472 = vmatpush1.msra.mxu0 0.0
      %473 = vmatprep.subr.mxu0 0.0
      %474 = vmatpush1.msra.mxu0 0.0
      %475 = vmatprep.subr.mxu0 0.0
      %476 = vmatpush1.msra.mxu0 0.0
      %477 = vmatprep.subr.mxu0 0.0
      %478 = vmatpush1.msra.mxu0 0.0
      %479 = vmatprep.subr.mxu0 0.0
      %480 = vmatpush1.msra.mxu0 0.0
      %481 = vmatprep.subr.mxu0 0.0
      %482 = vmatpush1.msra.mxu0 0.0
      %483 = vmatprep.subr.mxu0 0.0
      %484 = vmatpush1.msra.mxu0 0.0
      %485 = vmatprep.subr.mxu0 0.0
      %486 = vmatpush1.msra.mxu0 0.0
      %487 = vmatprep.subr.mxu0 0.0
      %488 = vmatpush1.msra.mxu0 0.0
      %489 = vmatprep.subr.mxu0 0.0
      %490 = vmatpush1.msra.mxu0 0.0
      %491 = vmatprep.mubr.f32.mxu0 0.0
      %492 = vmatmul.mubr.f32.gmra.mrb[0].mxu0 %v425
      %v493 = vpop.f32.mrb[0].mxu0
      %v494 = vadd.f32 %v421, %v493
      %v495 = vpop.f32.mrb[0].mxu0
      %v496 = vadd.f32 %v421, %v495
      %497 = vdwg.mxu0
      %vm498 = vcmp.ge.f32.partialorder %v494, 0.0
      %vm499 = vcmp.ge.f32.partialorder %v496, 0.0
      %v500 = vmul.f32 %v494, 0.01
      %v501 = vmul.f32 %v496, 0.01
      %v502 = vsel %vm498, %v494, %v500
      %v503 = vsel %vm499, %v496, %v501
      %504 = vrot.lane.b32.xlu0 %v502, 17
      %v505 = vpop.permute.xlu0 %504
      %506 = vrot.lane.b32.xlu0 %v503, 17
      %v507 = vpop.permute.xlu0 %506
      %v508 = vsel %vm276, %v505, %v507
      %v509 = vsel %vm276, %v507, %v505
      %v510 = vmul.f32 %v509, %v282
      %v511 = vmul.f32 %v508, %v286
      %512 = vrot.lane.b32.xlu0 %v502, 16
      %v513 = vpop.permute.xlu0 %512
      %514 = vrot.lane.b32.xlu0 %v503, 16
      %v515 = vpop.permute.xlu0 %514
      %v516 = vsel %vm293, %v513, %v515
      %v517 = vsel %vm293, %v515, %v513
      %v518 = vmul.f32 %v517, %v299
      %v519 = vmul.f32 %v516, %v303
      %520 = vrot.lane.b32.xlu0 %v502, 15
      %v521 = vpop.permute.xlu0 %520
      %522 = vrot.lane.b32.xlu0 %v503, 15
      %v523 = vpop.permute.xlu0 %522
      %v524 = vsel %vm310, %v521, %v523
      %v525 = vsel %vm310, %v523, %v521
      %v526 = vmul.f32 %v525, %v316
      %v527 = vmul.f32 %v524, %v320
      %528 = vrot.lane.b32.xlu0 %v502, 1
      %v529 = vpop.permute.xlu0 %528
      %530 = vrot.lane.b32.xlu0 %v503, 1
      %v531 = vpop.permute.xlu0 %530
      %v532 = vsel %vm327, %v529, %v531
      %v533 = vsel %vm327, %v531, %v529
      %v534 = vmul.f32 %v533, %v333
      %v535 = vmul.f32 %v532, %v337
      %v536 = vmul.f32 %v502, %v343
      %v537 = vmul.f32 %v503, %v347
      %538 = vrot.lane.b32.xlu0 %v502, 127
      %v539 = vpop.permute.xlu0 %538
      %540 = vrot.lane.b32.xlu0 %v503, 127
      %v541 = vpop.permute.xlu0 %540
      %v542 = vsel %vm354, %v539, %v541
      %v543 = vsel %vm354, %v541, %v539
      %v544 = vmul.f32 %v542, %v360
      %v545 = vmul.f32 %v543, %v364
      %546 = vrot.lane.b32.xlu0 %v502, 113
      %v547 = vpop.permute.xlu0 %546
      %548 = vrot.lane.b32.xlu0 %v503, 113
      %v549 = vpop.permute.xlu0 %548
      %v550 = vsel %vm371, %v547, %v549
      %v551 = vsel %vm371, %v549, %v547
      %v552 = vmul.f32 %v550, %v377
      %v553 = vmul.f32 %v551, %v381
      %554 = vrot.lane.b32.xlu0 %v502, 112
      %v555 = vpop.permute.xlu0 %554
      %556 = vrot.lane.b32.xlu0 %v503, 112
      %v557 = vpop.permute.xlu0 %556
      %v558 = vsel %vm388, %v555, %v557
      %v559 = vsel %vm388, %v557, %v555
      %v560 = vmul.f32 %v558, %v394
      %v561 = vmul.f32 %v559, %v398
      %562 = vrot.lane.b32.xlu0 %v502, 111
      %v563 = vpop.permute.xlu0 %562
      %564 = vrot.lane.b32.xlu0 %v503, 111
      %v565 = vpop.permute.xlu0 %564
      %v566 = vsel %vm405, %v563, %v565
      %v567 = vsel %vm405, %v565, %v563
      %v568 = vmul.f32 %v566, %v411
      %v569 = vmul.f32 %v567, %v415
      %571 = vset.pattern.permute.xlu0 0
      %572 = vperm.xlu0 %571, %v267
      %v573 = vpop.permute.xlu0 %572
      %v576 = vsel %vm423, %v265, 0
      %578 = vmatprep.subr.mxu0 %v511
      %579 = vmatpush1.msra.mxu0 %v510
      %580 = vmatprep.subr.mxu0 %v519
      %581 = vmatpush1.msra.mxu0 %v518
      %582 = vmatprep.subr.mxu0 %v527
      %583 = vmatpush1.msra.mxu0 %v526
      %584 = vmatprep.subr.mxu0 %v535
      %585 = vmatpush1.msra.mxu0 %v534
      %586 = vmatprep.subr.mxu0 %v537
      %587 = vmatpush1.msra.mxu0 %v536
      %588 = vmatprep.subr.mxu0 %v545
      %589 = vmatpush1.msra.mxu0 %v544
      %590 = vmatprep.subr.mxu0 %v553
      %591 = vmatpush1.msra.mxu0 %v552
      %592 = vmatprep.subr.mxu0 %v561
      %593 = vmatpush1.msra.mxu0 %v560
      %594 = vmatprep.subr.mxu0 %v569
      %595 = vmatpush1.msra.mxu0 %v568
      %596 = vmatprep.subr.mxu0 0.0
      %597 = vmatpush1.msra.mxu0 0.0
      %598 = vmatprep.subr.mxu0 0.0
      %599 = vmatpush1.msra.mxu0 0.0
      %600 = vmatprep.subr.mxu0 0.0
      %601 = vmatpush1.msra.mxu0 0.0
      %602 = vmatprep.subr.mxu0 0.0
      %603 = vmatpush1.msra.mxu0 0.0
      %604 = vmatprep.subr.mxu0 0.0
      %605 = vmatpush1.msra.mxu0 0.0
      %606 = vmatprep.subr.mxu0 0.0
      %607 = vmatpush1.msra.mxu0 0.0
      %608 = vmatprep.subr.mxu0 0.0
      %609 = vmatpush1.msra.mxu0 0.0
      %610 = vmatprep.subr.mxu0 0.0
      %611 = vmatpush1.msra.mxu0 0.0
      %612 = vmatprep.subr.mxu0 0.0
      %613 = vmatpush1.msra.mxu0 0.0
      %614 = vmatprep.subr.mxu0 0.0
      %615 = vmatpush1.msra.mxu0 0.0
      %616 = vmatprep.subr.mxu0 0.0
      %617 = vmatpush1.msra.mxu0 0.0
      %618 = vmatprep.subr.mxu0 0.0
      %619 = vmatpush1.msra.mxu0 0.0
      %620 = vmatprep.subr.mxu0 0.0
      %621 = vmatpush1.msra.mxu0 0.0
      %622 = vmatprep.subr.mxu0 0.0
      %623 = vmatpush1.msra.mxu0 0.0
      %624 = vmatprep.subr.mxu0 0.0
      %625 = vmatpush1.msra.mxu0 0.0
      %626 = vmatprep.subr.mxu0 0.0
      %627 = vmatpush1.msra.mxu0 0.0
      %628 = vmatprep.subr.mxu0 0.0
      %629 = vmatpush1.msra.mxu0 0.0
      %630 = vmatprep.subr.mxu0 0.0
      %631 = vmatpush1.msra.mxu0 0.0
      %632 = vmatprep.subr.mxu0 0.0
      %633 = vmatpush1.msra.mxu0 0.0
      %634 = vmatprep.subr.mxu0 0.0
      %635 = vmatpush1.msra.mxu0 0.0
      %636 = vmatprep.subr.mxu0 0.0
      %637 = vmatpush1.msra.mxu0 0.0
      %638 = vmatprep.subr.mxu0 0.0
      %639 = vmatpush1.msra.mxu0 0.0
      %640 = vmatprep.subr.mxu0 0.0
      %641 = vmatpush1.msra.mxu0 0.0
      %642 = vmatprep.mubr.f32.mxu0 0.0
      %643 = vmatmul.mubr.f32.gmra.mrb[0].mxu0 %v576
      %v644 = vpop.f32.mrb[0].mxu0
      %v645 = vadd.f32 %v573, %v644
      %v646 = vpop.f32.mrb[0].mxu0
      %v647 = vadd.f32 %v573, %v646
      %648 = vdwg.mxu0
      %v649 = vadd.f32 %v645, %v268
      %v650 = vadd.f32 %v647, %v269
      %vm651 = vcmp.ge.f32.partialorder %v649, 0.0
      %vm652 = vcmp.ge.f32.partialorder %v650, 0.0
      %v653 = vmul.f32 %v649, 0.01
      %v654 = vmul.f32 %v650, 0.01
      %v655 = vsel %vm651, %v649, %v653
      %v656 = vsel %vm652, %v650, %v654
      %657 = vst [vmem:[%s258] sm:$0xff] %v655
      %658 = vst [vmem:[%s258 + $0x8] sm:$0xff] %v656
      %s659 = scalar_lea.vmem %s251, 16
      %v660 = vld [vmem:[%s659] sm:$0xff]
      %v661 = vld [vmem:[%s659 + $0x8] sm:$0xff]
      %662 = vrot.lane.b32.xlu0 %v660, 17
      %v663 = vpop.permute.xlu0 %662
      %664 = vrot.lane.b32.xlu0 %v661, 17
      %v665 = vpop.permute.xlu0 %664
      %v666 = vsel %vm276, %v663, %v665
      %v667 = vsel %vm276, %v665, %v663
      %v668 = vmul.f32 %v667, %v282
      %v669 = vmul.f32 %v666, %v286
      %670 = vrot.lane.b32.xlu0 %v660, 16
      %v671 = vpop.permute.xlu0 %670
      %672 = vrot.lane.b32.xlu0 %v661, 16
      %v673 = vpop.permute.xlu0 %672
      %v674 = vsel %vm293, %v671, %v673
      %v675 = vsel %vm293, %v673, %v671
      %v676 = vmul.f32 %v675, %v299
      %v677 = vmul.f32 %v674, %v303
      %678 = vrot.lane.b32.xlu0 %v660, 15
      %v679 = vpop.permute.xlu0 %678
      %680 = vrot.lane.b32.xlu0 %v661, 15
      %v681 = vpop.permute.xlu0 %680
      %v682 = vsel %vm310, %v679, %v681
      %v683 = vsel %vm310, %v681, %v679
      %v684 = vmul.f32 %v683, %v316
      %v685 = vmul.f32 %v682, %v320
      %686 = vrot.lane.b32.xlu0 %v660, 1
      %v687 = vpop.permute.xlu0 %686
      %688 = vrot.lane.b32.xlu0 %v661, 1
      %v689 = vpop.permute.xlu0 %688
      %v690 = vsel %vm327, %v687, %v689
      %v691 = vsel %vm327, %v689, %v687
      %v692 = vmul.f32 %v691, %v333
      %v693 = vmul.f32 %v690, %v337
      %v694 = vmul.f32 %v660, %v343
      %v695 = vmul.f32 %v661, %v347
      %696 = vrot.lane.b32.xlu0 %v660, 127
      %v697 = vpop.permute.xlu0 %696
      %698 = vrot.lane.b32.xlu0 %v661, 127
      %v699 = vpop.permute.xlu0 %698
      %v700 = vsel %vm354, %v697, %v699
      %v701 = vsel %vm354, %v699, %v697
      %v702 = vmul.f32 %v700, %v360
      %v703 = vmul.f32 %v701, %v364
      %704 = vrot.lane.b32.xlu0 %v660, 113
      %v705 = vpop.permute.xlu0 %704
      %706 = vrot.lane.b32.xlu0 %v661, 113
      %v707 = vpop.permute.xlu0 %706
      %v708 = vsel %vm371, %v705, %v707
      %v709 = vsel %vm371, %v707, %v705
      %v710 = vmul.f32 %v708, %v377
      %v711 = vmul.f32 %v709, %v381
      %712 = vrot.lane.b32.xlu0 %v660, 112
      %v713 = vpop.permute.xlu0 %712
      %714 = vrot.lane.b32.xlu0 %v661, 112
      %v715 = vpop.permute.xlu0 %714
      %v716 = vsel %vm388, %v713, %v715
      %v717 = vsel %vm388, %v715, %v713
      %v718 = vmul.f32 %v716, %v394
      %v719 = vmul.f32 %v717, %v398
      %720 = vrot.lane.b32.xlu0 %v660, 111
      %v721 = vpop.permute.xlu0 %720
      %722 = vrot.lane.b32.xlu0 %v661, 111
      %v723 = vpop.permute.xlu0 %722
      %v724 = vsel %vm405, %v721, %v723
      %v725 = vsel %vm405, %v723, %v721
      %v726 = vmul.f32 %v724, %v411
      %v727 = vmul.f32 %v725, %v415
      %728 = vmatprep.subr.mxu0 %v669
      %729 = vmatpush1.msra.mxu0 %v668
      %730 = vmatprep.subr.mxu0 %v677
      %731 = vmatpush1.msra.mxu0 %v676
      %732 = vmatprep.subr.mxu0 %v685
      %733 = vmatpush1.msra.mxu0 %v684
      %734 = vmatprep.subr.mxu0 %v693
      %735 = vmatpush1.msra.mxu0 %v692
      %736 = vmatprep.subr.mxu0 %v695
      %737 = vmatpush1.msra.mxu0 %v694
      %738 = vmatprep.subr.mxu0 %v703
      %739 = vmatpush1.msra.mxu0 %v702
      %740 = vmatprep.subr.mxu0 %v711
      %741 = vmatpush1.msra.mxu0 %v710
      %742 = vmatprep.subr.mxu0 %v719
      %743 = vmatpush1.msra.mxu0 %v718
      %744 = vmatprep.subr.mxu0 %v727
      %745 = vmatpush1.msra.mxu0 %v726
      %746 = vmatprep.subr.mxu0 0.0
      %747 = vmatpush1.msra.mxu0 0.0
      %748 = vmatprep.subr.mxu0 0.0
      %749 = vmatpush1.msra.mxu0 0.0
      %750 = vmatprep.subr.mxu0 0.0
      %751 = vmatpush1.msra.mxu0 0.0
      %752 = vmatprep.subr.mxu0 0.0
      %753 = vmatpush1.msra.mxu0 0.0
      %754 = vmatprep.subr.mxu0 0.0
      %755 = vmatpush1.msra.mxu0 0.0
      %756 = vmatprep.subr.mxu0 0.0
      %757 = vmatpush1.msra.mxu0 0.0
      %758 = vmatprep.subr.mxu0 0.0
      %759 = vmatpush1.msra.mxu0 0.0
      %760 = vmatprep.subr.mxu0 0.0
      %761 = vmatpush1.msra.mxu0 0.0
      %762 = vmatprep.subr.mxu0 0.0
      %763 = vmatpush1.msra.mxu0 0.0
      %764 = vmatprep.subr.mxu0 0.0
      %765 = vmatpush1.msra.mxu0 0.0
      %766 = vmatprep.subr.mxu0 0.0
      %767 = vmatpush1.msra.mxu0 0.0
      %768 = vmatprep.subr.mxu0 0.0
      %769 = vmatpush1.msra.mxu0 0.0
      %770 = vmatprep.subr.mxu0 0.0
      %771 = vmatpush1.msra.mxu0 0.0
      %772 = vmatprep.subr.mxu0 0.0
      %773 = vmatpush1.msra.mxu0 0.0
      %774 = vmatprep.subr.mxu0 0.0
      %775 = vmatpush1.msra.mxu0 0.0
      %776 = vmatprep.subr.mxu0 0.0
      %777 = vmatpush1.msra.mxu0 0.0
      %778 = vmatprep.subr.mxu0 0.0
      %779 = vmatpush1.msra.mxu0 0.0
      %780 = vmatprep.subr.mxu0 0.0
      %781 = vmatpush1.msra.mxu0 0.0
      %782 = vmatprep.subr.mxu0 0.0
      %783 = vmatpush1.msra.mxu0 0.0
      %784 = vmatprep.subr.mxu0 0.0
      %785 = vmatpush1.msra.mxu0 0.0
      %786 = vmatprep.subr.mxu0 0.0
      %787 = vmatpush1.msra.mxu0 0.0
      %788 = vmatprep.subr.mxu0 0.0
      %789 = vmatpush1.msra.mxu0 0.0
      %790 = vmatprep.subr.mxu0 0.0
      %791 = vmatpush1.msra.mxu0 0.0
      %792 = vmatprep.mubr.f32.mxu0 0.0
      %793 = vmatmul.mubr.f32.gmra.mrb[0].mxu0 %v425
      %v794 = vpop.f32.mrb[0].mxu0
      %v795 = vadd.f32 %v421, %v794
      %v796 = vpop.f32.mrb[0].mxu0
      %v797 = vadd.f32 %v421, %v796
      %798 = vdwg.mxu0
      %vm799 = vcmp.ge.f32.partialorder %v795, 0.0
      %vm800 = vcmp.ge.f32.partialorder %v797, 0.0
      %v801 = vmul.f32 %v795, 0.01
      %v802 = vmul.f32 %v797, 0.01
      %v803 = vsel %vm799, %v795, %v801
      %v804 = vsel %vm800, %v797, %v802
      %805 = vrot.lane.b32.xlu0 %v803, 17
      %v806 = vpop.permute.xlu0 %805
      %807 = vrot.lane.b32.xlu0 %v804, 17
      %v808 = vpop.permute.xlu0 %807
      %v809 = vsel %vm276, %v806, %v808
      %v810 = vsel %vm276, %v808, %v806
      %v811 = vmul.f32 %v810, %v282
      %v812 = vmul.f32 %v809, %v286
      %813 = vrot.lane.b32.xlu0 %v803, 16
      %v814 = vpop.permute.xlu0 %813
      %815 = vrot.lane.b32.xlu0 %v804, 16
      %v816 = vpop.permute.xlu0 %815
      %v817 = vsel %vm293, %v814, %v816
      %v818 = vsel %vm293, %v816, %v814
      %v819 = vmul.f32 %v818, %v299
      %v820 = vmul.f32 %v817, %v303
      %821 = vrot.lane.b32.xlu0 %v803, 15
      %v822 = vpop.permute.xlu0 %821
      %823 = vrot.lane.b32.xlu0 %v804, 15
      %v824 = vpop.permute.xlu0 %823
      %v825 = vsel %vm310, %v822, %v824
      %v826 = vsel %vm310, %v824, %v822
      %v827 = vmul.f32 %v826, %v316
      %v828 = vmul.f32 %v825, %v320
      %829 = vrot.lane.b32.xlu0 %v803, 1
      %v830 = vpop.permute.xlu0 %829
      %831 = vrot.lane.b32.xlu0 %v804, 1
      %v832 = vpop.permute.xlu0 %831
      %v833 = vsel %vm327, %v830, %v832
      %v834 = vsel %vm327, %v832, %v830
      %v835 = vmul.f32 %v834, %v333
      %v836 = vmul.f32 %v833, %v337
      %v837 = vmul.f32 %v803, %v343
      %v838 = vmul.f32 %v804, %v347
      %839 = vrot.lane.b32.xlu0 %v803, 127
      %v840 = vpop.permute.xlu0 %839
      %841 = vrot.lane.b32.xlu0 %v804, 127
      %v842 = vpop.permute.xlu0 %841
      %v843 = vsel %vm354, %v840, %v842
      %v844 = vsel %vm354, %v842, %v840
      %v845 = vmul.f32 %v843, %v360
      %v846 = vmul.f32 %v844, %v364
      %847 = vrot.lane.b32.xlu0 %v803, 113
      %v848 = vpop.permute.xlu0 %847
      %849 = vrot.lane.b32.xlu0 %v804, 113
      %v850 = vpop.permute.xlu0 %849
      %v851 = vsel %vm371, %v848, %v850
      %v852 = vsel %vm371, %v850, %v848
      %v853 = vmul.f32 %v851, %v377
      %v854 = vmul.f32 %v852, %v381
      %855 = vrot.lane.b32.xlu0 %v803, 112
      %v856 = vpop.permute.xlu0 %855
      %857 = vrot.lane.b32.xlu0 %v804, 112
      %v858 = vpop.permute.xlu0 %857
      %v859 = vsel %vm388, %v856, %v858
      %v860 = vsel %vm388, %v858, %v856
      %v861 = vmul.f32 %v859, %v394
      %v862 = vmul.f32 %v860, %v398
      %863 = vrot.lane.b32.xlu0 %v803, 111
      %v864 = vpop.permute.xlu0 %863
      %865 = vrot.lane.b32.xlu0 %v804, 111
      %v866 = vpop.permute.xlu0 %865
      %v867 = vsel %vm405, %v864, %v866
      %v868 = vsel %vm405, %v866, %v864
      %v869 = vmul.f32 %v867, %v411
      %v870 = vmul.f32 %v868, %v415
      %871 = vmatprep.subr.mxu0 %v812
      %872 = vmatpush1.msra.mxu0 %v811
      %873 = vmatprep.subr.mxu0 %v820
      %874 = vmatpush1.msra.mxu0 %v819
      %875 = vmatprep.subr.mxu0 %v828
      %876 = vmatpush1.msra.mxu0 %v827
      %877 = vmatprep.subr.mxu0 %v836
      %878 = vmatpush1.msra.mxu0 %v835
      %879 = vmatprep.subr.mxu0 %v838
      %880 = vmatpush1.msra.mxu0 %v837
      %881 = vmatprep.subr.mxu0 %v846
      %882 = vmatpush1.msra.mxu0 %v845
      %883 = vmatprep.subr.mxu0 %v854
      %884 = vmatpush1.msra.mxu0 %v853
      %885 = vmatprep.subr.mxu0 %v862
      %886 = vmatpush1.msra.mxu0 %v861
      %887 = vmatprep.subr.mxu0 %v870
      %888 = vmatpush1.msra.mxu0 %v869
      %889 = vmatprep.subr.mxu0 0.0
      %890 = vmatpush1.msra.mxu0 0.0
      %891 = vmatprep.subr.mxu0 0.0
      %892 = vmatpush1.msra.mxu0 0.0
      %893 = vmatprep.subr.mxu0 0.0
      %894 = vmatpush1.msra.mxu0 0.0
      %895 = vmatprep.subr.mxu0 0.0
      %896 = vmatpush1.msra.mxu0 0.0
      %897 = vmatprep.subr.mxu0 0.0
      %898 = vmatpush1.msra.mxu0 0.0
      %899 = vmatprep.subr.mxu0 0.0
      %900 = vmatpush1.msra.mxu0 0.0
      %901 = vmatprep.subr.mxu0 0.0
      %902 = vmatpush1.msra.mxu0 0.0
      %903 = vmatprep.subr.mxu0 0.0
      %904 = vmatpush1.msra.mxu0 0.0
      %905 = vmatprep.subr.mxu0 0.0
      %906 = vmatpush1.msra.mxu0 0.0
      %907 = vmatprep.subr.mxu0 0.0
      %908 = vmatpush1.msra.mxu0 0.0
      %909 = vmatprep.subr.mxu0 0.0
      %910 = vmatpush1.msra.mxu0 0.0
      %911 = vmatprep.subr.mxu0 0.0
      %912 = vmatpush1.msra.mxu0 0.0
      %913 = vmatprep.subr.mxu0 0.0
      %914 = vmatpush1.msra.mxu0 0.0
      %915 = vmatprep.subr.mxu0 0.0
      %916 = vmatpush1.msra.mxu0 0.0
      %917 = vmatprep.subr.mxu0 0.0
      %918 = vmatpush1.msra.mxu0 0.0
      %919 = vmatprep.subr.mxu0 0.0
      %920 = vmatpush1.msra.mxu0 0.0
      %921 = vmatprep.subr.mxu0 0.0
      %922 = vmatpush1.msra.mxu0 0.0
      %923 = vmatprep.subr.mxu0 0.0
      %924 = vmatpush1.msra.mxu0 0.0
      %925 = vmatprep.subr.mxu0 0.0
      %926 = vmatpush1.msra.mxu0 0.0
      %927 = vmatprep.subr.mxu0 0.0
      %928 = vmatpush1.msra.mxu0 0.0
      %929 = vmatprep.subr.mxu0 0.0
      %930 = vmatpush1.msra.mxu0 0.0
      %931 = vmatprep.subr.mxu0 0.0
      %932 = vmatpush1.msra.mxu0 0.0
      %933 = vmatprep.subr.mxu0 0.0
      %934 = vmatpush1.msra.mxu0 0.0
      %935 = vmatprep.mubr.f32.mxu0 0.0
      %936 = vmatmul.mubr.f32.gmra.mrb[0].mxu0 %v576
      %v937 = vpop.f32.mrb[0].mxu0
      %v938 = vadd.f32 %v573, %v937
      %v939 = vpop.f32.mrb[0].mxu0
      %v940 = vadd.f32 %v573, %v939
      %941 = vdwg.mxu0
      %v942 = vadd.f32 %v938, %v660
      %v943 = vadd.f32 %v940, %v661
      %vm944 = vcmp.ge.f32.partialorder %v942, 0.0
      %vm945 = vcmp.ge.f32.partialorder %v943, 0.0
      %v946 = vmul.f32 %v942, 0.01
      %v947 = vmul.f32 %v943, 0.01
      %v948 = vsel %vm944, %v942, %v946
      %v949 = vsel %vm945, %v943, %v947
      %s950 = scalar_lea.vmem %s258, 16
      %951 = vst [vmem:[%s950] sm:$0xff] %v948
      %952 = vst [vmem:[%s950 + $0x8] sm:$0xff] %v949
      %s953 = smul.u32 2, %s17
      %p954 = scmp.lt.s32.totalorder %s953, 3
      %s955 = scalar_select %p954, %s953, 3
      %s956 = smul.addr %s955, 2
      %s957 = smul.addr %s956, 8
      %s958 = scalar_lea.vmem %s6, %s957
      // Predicated region
      $region45: #{residual_block.1} parent=43 // pred_check
        %p959 = pneg %p166
      $region46: #{residual_block.1} parent=43 // pred_check_branch
        %961 = sbr.rel (%p959) target = $region48
      $region47: #{residual_block.1} parent=43 // pred_region
        %s962 = smul.u32 2, %s17
      $region48: #{residual_block.1} parent=43 // pred_fallthru
        _
    $region44: #{residual_block.1} parent=5 // pred_fallthru
      _
    %p963 = scmp.le.s32.totalorder 2, %s12
    // Predicated region
    $region49: #{residual_block.1} parent=5 // pred_check
      %p964 = pneg %p963
    $region50: #{residual_block.1} parent=5 // pred_check_branch
      %966 = sbr.rel (%p964) target = $region52
    $region51: #{residual_block.1} parent=5 // pred_region
      %s967 = ssub.s32 %s12, 2
      // Predicated region
      $region53: #{residual_block.1} parent=51 // pred_check
        %p968 = pneg %p172
      $region54: #{residual_block.1} parent=51 // pred_check_branch
        %970 = sbr.rel (%p968) target = $region56
      $region55: #{residual_block.1} parent=51 // pred_region
        %s971 = smul.u32 2, %s18
        %p972 = scmp.lt.s32.totalorder %s971, 3
        %s973 = scalar_select %p972, %s971, 3
        %s974 = smul.addr %s973, 2
        %s975 = smul.addr %s974, 8
        %s976 = scalar_lea.vmem %s6, %s975
      $region56: #{residual_block.1} parent=51 // pred_fallthru
        _
    $region52: #{residual_block.1} parent=5 // pred_fallthru
      _
  $region6: #{residual_block.1} parent=0 // loop_footer
    %s16 = sadd.s32 1, %s12
  $region7: #{residual_block.1} parent=0 // loop_footer_branch
    %11 = sbr.rel target = $region3
  $region8: #{residual_block.1} parent=0 // loop_exit
    _

</llo_original>
